<compile_context>
chip_gen: v7x
topology: tpu7x:2x2x1
jax: 0.10.0
libtpu: 0.0.40
codegen_flags: <defaults>
</compile_context>

<pallas_src>
import functools

import jax
import jax.numpy as jnp
from jax.experimental import pallas as pl
from jax.experimental.pallas import tpu as pltpu


def _round_up(x, m):
    return (x + m - 1) // m * m


# --------------------------------------------------------------------------- #
# Kernel 1: fused im2col-matmul conv (+bias) and per-block batch-stat partials #
# --------------------------------------------------------------------------- #
def _conv_stats_kernel(p_ref, w_ref, b_ref, out_ref, sum_ref, sq_ref):
    # p_ref:   (T, CK)     bf16  im2col patch rows for this row tile
    # w_ref:   (CK, Cp)    bf16  flattened (K*K*Cin -> CK) x (Cout -> Cp) weights
    # b_ref:   (1, Cp)     f32   conv bias (padded)
    # out_ref: (T, Cp)     bf16  conv + bias for this tile
    # sum_ref/sq_ref: (1, 1, Cp) f32  per-block partial sum / sum-of-squares
    acc = jnp.dot(p_ref[...], w_ref[...], preferred_element_type=jnp.float32)
    acc = acc + b_ref[...]                       # broadcast (1, Cp)
    out_ref[...] = acc.astype(out_ref.dtype)

    # Per-channel reductions over rows done on the MXU (ones-row matmul),
    # keeping the XLU / VPU slots free.
    ones_row = jnp.ones((1, acc.shape[0]), jnp.float32)
    sum_ref[...] = jnp.dot(ones_row, acc, preferred_element_type=jnp.float32)[None]
    sq_ref[...] = jnp.dot(ones_row, acc * acc, preferred_element_type=jnp.float32)[None]


# --------------------------------------------------------------------------- #
# Kernel 2: fused BN affine + LeakyReLU on flattened lane-dense rows           #
# --------------------------------------------------------------------------- #
def _bn_lrelu_kernel(y_ref, scale_ref, shift_ref, out_ref, *, slope):
    # y_ref: (T, Cp) bf16; scale/shift: (1, Cp) f32; out_ref: (T, Cp) f32
    z = y_ref[...].astype(jnp.float32) * scale_ref[...] + shift_ref[...]
    out_ref[...] = jnp.where(z > 0, z, slope * z)


def conv_block_forward(x_nchw, weight, bias, gamma, beta,
                       *, kernel_size=3, padding=1, stride=1,
                       eps=1e-5, negative_slope=0.2):
    """Forward pass of ConvBlock.

    x_nchw: (N, Cin, H, W) float32; weight: (Cout, Cin, K, K); bias/gamma/beta: (Cout,).
    Returns (N, Cout, H, W) float32.
    """
    assert stride == 1, "ConvBlock default stride=1 is implemented"
    N, Cin, H, W = x_nchw.shape
    Cout = weight.shape[0]
    K = kernel_size

    Ho = (H + 2 * padding - K) // stride + 1
    Wo = (W + 2 * padding - K) // stride + 1

    # ---- glue: layout + im2col (plain JAX; kernel sees one dense matmul) ----
    x = jnp.transpose(x_nchw, (0, 2, 3, 1))                       # NHWC
    x_pad = jnp.pad(x, ((0, 0), (padding, padding), (padding, padding), (0, 0)))
    cols = []
    for kh in range(K):
        for kw in range(K):
            cols.append(x_pad[:, kh:kh + Ho, kw:kw + Wo, :])      # (N, Ho, Wo, Cin)
    patches = jnp.concatenate(cols, axis=-1).reshape(N * Ho * Wo, K * K * Cin)

    # lane-dense padding
    CK = _round_up(K * K * Cin, 128)          # contraction depth (>=128 fills v5e MXU)
    Cp = _round_up(Cout, 128)                 # output channels on the lane axis
    rows = N * Ho * Wo
    ROW_TILE = min(1024, _round_up(rows, 8))
    rows_pad = _round_up(rows, ROW_TILE)
    n_blocks = rows_pad // ROW_TILE
    n_pad_rows = rows_pad - rows

    patches = jnp.pad(patches, ((0, n_pad_rows), (0, CK - K * K * Cin)))
    patches = patches.astype(jnp.bfloat16)                        # bf16 MXU operands
    w2d = jnp.transpose(weight, (2, 3, 1, 0)).reshape(K * K * Cin, Cout)
    w2d = jnp.pad(w2d, ((0, CK - K * K * Cin), (0, Cp - Cout))).astype(jnp.bfloat16)
    b2d = jnp.pad(bias, (0, Cp - Cout)).reshape(1, Cp).astype(jnp.float32)

    vmem_lim = 32 * 1024 * 1024  # well above need; within every generation's VMEM

    # ---- kernel 1: conv(+bias) + per-block batch-stat partials ----
    conv2d, psum, psq = pl.pallas_call(
        _conv_stats_kernel,
        out_shape=(
            jax.ShapeDtypeStruct((rows_pad, Cp), jnp.bfloat16),
            jax.ShapeDtypeStruct((n_blocks, 1, Cp), jnp.float32),
            jax.ShapeDtypeStruct((n_blocks, 1, Cp), jnp.float32),
        ),
        grid=(n_blocks,),
        in_specs=[
            pl.BlockSpec((ROW_TILE, CK), lambda r: (r, 0)),
            pl.BlockSpec((CK, Cp), lambda r: (0, 0)),
            pl.BlockSpec((1, Cp), lambda r: (0, 0)),
        ],
        out_specs=(
            pl.BlockSpec((ROW_TILE, Cp), lambda r: (r, 0)),
            pl.BlockSpec((1, 1, Cp), lambda r: (r, 0, 0)),
            pl.BlockSpec((1, 1, Cp), lambda r: (r, 0, 0)),
        ),
        compiler_params=pltpu.CompilerParams(
            dimension_semantics=("parallel",),        # partials -> no cross-step race
            vmem_limit_bytes=vmem_lim),
    )(patches, w2d, b2d)

    # ---- tiny per-channel glue: BN training-mode batch statistics ----
    # Padded rows contributed exactly `bias` (zero patches) per row; subtract them.
    count = jnp.float32(rows)
    ch_sum = jnp.sum(psum[:, 0, :], axis=0) - n_pad_rows * b2d[0]
    ch_sq = jnp.sum(psq[:, 0, :], axis=0) - n_pad_rows * (b2d[0] * b2d[0])
    mean = ch_sum / count
    var = jnp.maximum(ch_sq / count - mean * mean, 0.0)   # clamp (rounding) before rsqrt
    gamma_p = jnp.pad(gamma, (0, Cp - Cout)).astype(jnp.float32)
    beta_p = jnp.pad(beta, (0, Cp - Cout)).astype(jnp.float32)
    scale = gamma_p * jax.lax.rsqrt(var + eps)
    shift = beta_p - mean * scale

    # ---- kernel 2: fused BN affine + LeakyReLU over flattened lane-dense rows ----
    y2d = pl.pallas_call(
        functools.partial(_bn_lrelu_kernel, slope=negative_slope),
        out_shape=jax.ShapeDtypeStruct((rows_pad, Cp), jnp.float32),
        grid=(n_blocks,),
        in_specs=[
            pl.BlockSpec((ROW_TILE, Cp), lambda r: (r, 0)),
            pl.BlockSpec((1, Cp), lambda r: (0, 0)),
            pl.BlockSpec((1, Cp), lambda r: (0, 0)),
        ],
        out_specs=pl.BlockSpec((ROW_TILE, Cp), lambda r: (r, 0)),
        compiler_params=pltpu.CompilerParams(
            dimension_semantics=("parallel",),
            vmem_limit_bytes=vmem_lim),
    )(conv2d, scale.reshape(1, Cp), shift.reshape(1, Cp))

    y = y2d[:rows].reshape(N, Ho, Wo, Cp)[:, :, :, :Cout]
    return jnp.transpose(y, (0, 3, 1, 2))                 # back to NCHW


def _reference_forward(x_nchw, weight, bias, gamma, beta,
                       eps=1e-5, negative_slope=0.2):
    """Pure-JAX f32 reference (lax conv + train-mode BN + LeakyReLU)."""
    conv = jax.lax.conv_general_dilated(
        x_nchw, weight, window_strides=(1, 1), padding=((1, 1), (1, 1)),
        dimension_numbers=("NCHW", "OIHW", "NCHW"))
    conv = conv + bias.reshape(1, -1, 1, 1)
    mean = jnp.mean(conv, axis=(0, 2, 3), keepdims=True)
    var = jnp.mean((conv - mean) ** 2, axis=(0, 2, 3), keepdims=True)
    z = (conv - mean) / jnp.sqrt(var + eps)
    z = z * gamma.reshape(1, -1, 1, 1) + beta.reshape(1, -1, 1, 1)
    return jnp.where(z > 0, z, negative_slope * z)


if __name__ == "__main__":
    key = jax.random.PRNGKey(0)
    k_x, k_w, k_b, k_g, k_be = jax.random.split(key, 5)

    N, Cin, H, W = 2, 4, 16, 16
    Cout, K = 8, 3

    x = jax.random.normal(k_x, (N, Cin, H, W), dtype=jnp.float32)
    weight = jax.random.normal(k_w, (Cout, Cin, K, K), dtype=jnp.float32) * 0.1
    bias = jax.random.normal(k_b, (Cout,), dtype=jnp.float32) * 0.1
    gamma = 1.0 + 0.1 * jax.random.normal(k_g, (Cout,), dtype=jnp.float32)
    beta = 0.1 * jax.random.normal(k_be, (Cout,), dtype=jnp.float32)

    out = conv_block_forward(x, weight, bias, gamma, beta)
    out = jax.block_until_ready(out)

    ref = _reference_forward(x, weight, bias, gamma, beta)
    assert out.shape == (N, Cout, H, W)
    # bf16 MXU operands + bf16 conv intermediate (per perf review) -> looser tolerance
    # vs. the pure-f32 reference.
    assert jnp.allclose(out, ref, atol=5e-2, rtol=5e-2), "mismatch vs reference"

    print("KERNEL_OK")
</pallas_src>

<mosaic_0001>
module attributes {stable_mosaic.version = 11 : i64} {
  func.func @_conv_stats_kernel(%arg0: i32, %arg1: memref<512x128xbf16, #tpu.memory_space<vmem>>, %arg2: memref<128x128xbf16, #tpu.memory_space<vmem>>, %arg3: memref<1x128xf32, #tpu.memory_space<vmem>>, %arg4: memref<512x128xbf16, #tpu.memory_space<vmem>>, %arg5: memref<1x1x128xf32, #tpu.memory_space<vmem>>, %arg6: memref<1x1x128xf32, #tpu.memory_space<vmem>>) attributes {dimension_semantics = [#tpu.dimension_semantics<parallel>], iteration_bounds = array<i64: 1>, scalar_prefetch = 0 : i64, scratch_operands = 0 : i64, tpu.core_type = #tpu.core_type<tc>, window_params = [{transform_indices = @transform_0, window_bounds = array<i64: 512, 128>}, {pipeline_mode = #tpu.pipeline_mode<synchronous>, transform_indices = @transform_1, window_bounds = array<i64: 128, 128>}, {pipeline_mode = #tpu.pipeline_mode<synchronous>, transform_indices = @transform_2, window_bounds = array<i64: 1, 128>}, {transform_indices = @transform_3, window_bounds = array<i64: 512, 128>}, {transform_indices = @transform_4, window_bounds = array<i64: 1, 1, 128>}, {transform_indices = @transform_5, window_bounds = array<i64: 1, 1, 128>}]} {
    %c0 = arith.constant 0 : index
    %c0_0 = arith.constant 0 : index
    %0 = vector.load %arg1[%c0, %c0_0] : memref<512x128xbf16, #tpu.memory_space<vmem>>, vector<512x128xbf16>
    %c0_1 = arith.constant 0 : index
    %c0_2 = arith.constant 0 : index
    %1 = vector.load %arg2[%c0_1, %c0_2] : memref<128x128xbf16, #tpu.memory_space<vmem>>, vector<128x128xbf16>
    %cst = arith.constant dense<0.000000e+00> : vector<512x128xf32>
    %2 = tpu.matmul %0, %1, %cst {dimension_numbers = #tpu.dot_dimension_numbers<[1], [0], [0], [1], [0, 0, 1, 1], [], []>} : vector<512x128xbf16>, vector<128x128xbf16>, vector<512x128xf32> -> vector<512x128xf32>
    %c0_3 = arith.constant 0 : index
    %c0_4 = arith.constant 0 : index
    %3 = vector.load %arg3[%c0_3, %c0_4] : memref<1x128xf32, #tpu.memory_space<vmem>>, vector<1x128xf32>
    %4 = vector.broadcast %3 : vector<1x128xf32> to vector<512x128xf32>
    %5 = arith.addf %2, %4 : vector<512x128xf32>
    %6 = arith.truncf %5 : vector<512x128xf32> to vector<512x128xbf16>
    %c0_5 = arith.constant 0 : index
    %c0_6 = arith.constant 0 : index
    %7 = vector.load %arg4[%c0_5, %c0_6] : memref<512x128xbf16, #tpu.memory_space<vmem>>, vector<512x128xbf16>
    tpu.vector_store %arg4[%c0_5, %c0_6], %6 {strides = array<i32>} : memref<512x128xbf16, #tpu.memory_space<vmem>>, vector<512x128xbf16>,
    %cst_7 = arith.constant 1.000000e+00 : f32
    %8 = vector.broadcast %cst_7 : f32 to vector<1x512xf32>
    %cst_8 = arith.constant dense<0.000000e+00> : vector<1x128xf32>
    %9 = tpu.matmul %8, %5, %cst_8 {dimension_numbers = #tpu.dot_dimension_numbers<[1], [0], [0], [1], [0, 0, 1, 1], [], []>} : vector<1x512xf32>, vector<512x128xf32>, vector<1x128xf32> -> vector<1x128xf32>
    %10 = vector.shape_cast %9 : vector<1x128xf32> to vector<1x1x128xf32>
    %c0_9 = arith.constant 0 : index
    %c0_10 = arith.constant 0 : index
    %c0_11 = arith.constant 0 : index
    %11 = vector.load %arg5[%c0_9, %c0_10, %c0_11] : memref<1x1x128xf32, #tpu.memory_space<vmem>>, vector<1x1x128xf32>
    tpu.vector_store %arg5[%c0_9, %c0_10, %c0_11], %10 {strides = array<i32>} : memref<1x1x128xf32, #tpu.memory_space<vmem>>, vector<1x1x128xf32>,
    %12 = arith.mulf %5, %5 : vector<512x128xf32>
    %cst_12 = arith.constant dense<0.000000e+00> : vector<1x128xf32>
    %13 = tpu.matmul %8, %12, %cst_12 {dimension_numbers = #tpu.dot_dimension_numbers<[1], [0], [0], [1], [0, 0, 1, 1], [], []>} : vector<1x512xf32>, vector<512x128xf32>, vector<1x128xf32> -> vector<1x128xf32>
    %14 = vector.shape_cast %13 : vector<1x128xf32> to vector<1x1x128xf32>
    %c0_13 = arith.constant 0 : index
    %c0_14 = arith.constant 0 : index
    %c0_15 = arith.constant 0 : index
    %15 = vector.load %arg6[%c0_13, %c0_14, %c0_15] : memref<1x1x128xf32, #tpu.memory_space<vmem>>, vector<1x1x128xf32>
    tpu.vector_store %arg6[%c0_13, %c0_14, %c0_15], %14 {strides = array<i32>} : memref<1x1x128xf32, #tpu.memory_space<vmem>>, vector<1x1x128xf32>,
    return
  }
  func.func @transform_0(%arg0: i32) -> (i32, i32) {
    %c0_i32 = arith.constant 0 : i32
    %c0_i32_0 = arith.constant 0 : i32
    return %arg0, %c0_i32 : i32, i32
  }
  func.func @transform_1(%arg0: i32) -> (i32, i32) {
    %c0_i32 = arith.constant 0 : i32
    %c0_i32_0 = arith.constant 0 : i32
    %c0_i32_1 = arith.constant 0 : i32
    return %c0_i32, %c0_i32_0 : i32, i32
  }
  func.func @transform_2(%arg0: i32) -> (i32, i32) {
    %c0_i32 = arith.constant 0 : i32
    %c0_i32_0 = arith.constant 0 : i32
    %c0_i32_1 = arith.constant 0 : i32
    return %c0_i32, %c0_i32_0 : i32, i32
  }
  func.func @transform_3(%arg0: i32) -> (i32, i32) {
    %c0_i32 = arith.constant 0 : i32
    %c0_i32_0 = arith.constant 0 : i32
    return %arg0, %c0_i32 : i32, i32
  }
  func.func @transform_4(%arg0: i32) -> (i32, i32, i32) {
    %c0_i32 = arith.constant 0 : i32
    %c0_i32_0 = arith.constant 0 : i32
    %c0_i32_1 = arith.constant 0 : i32
    return %arg0, %c0_i32, %c0_i32_0 : i32, i32, i32
  }
  func.func @transform_5(%arg0: i32) -> (i32, i32, i32) {
    %c0_i32 = arith.constant 0 : i32
    %c0_i32_0 = arith.constant 0 : i32
    %c0_i32_1 = arith.constant 0 : i32
    return %arg0, %c0_i32, %c0_i32_0 : i32, i32, i32
  }
}

</mosaic_0001>

<llo_original>
// kernel: tpu_custom_call.1
$region0: #{tpu_custom_call.1}
  #allocation0 [shape = 'u32[]', space=smem, size = 0x4, offset = 0x4, fixed_abs, tag = 'smem constant byte address 0x4 - core index']
  #allocation1 [shape = 'u32[144,128]{1,0:T(1,128)}', space=vmem, size = 0x12000, scoped, tag = 'internal scratch']
  %s0 = inlined_call_operand.hbm [shape: bf16[512,128], index: 0, kind: input, shape index: {}]
  %s1 = inlined_call_operand.hbm [shape: bf16[128,128], index: 1, kind: input, shape index: {}]
  %s2 = inlined_call_operand.vmem [shape: f32[1,128], index: 2, kind: input, shape index: {}]
  %s3 = inlined_call_operand.hbm [shape: bf16[512,128], index: 3, kind: output, shape index: {0}]
  %s4 = inlined_call_operand.hbm [shape: f32[1,1,128], index: 4, kind: output, shape index: {1}]
  %s5 = inlined_call_operand.hbm [shape: f32[1,1,128], index: 5, kind: output, shape index: {2}]
  %6 = xla_tuple %s3, %s4, %s5
  %s7 = sld [smem:[#allocation0]]
  $region46: #{tpu_custom_call.1} parent=0
    _
  %s9 = ssub.s32 1, %s7
  %s10 = scalar_select 0, %s9, %s7
  $region1: #{tpu_custom_call.1} parent=0
    #allocation2 [shape = 'u8[131072]{0}', space=vmem, size = 0x20000, scoped, tag = 'input window, operand 0, single buffered']
    #allocation3 [shape = 's32[1]{0}', space=sflag, size = 0x4, scoped, tag = 'scoped memory for tpu_custom_call.1']
    #allocation4 [shape = 's32[1]{0}', space=sflag, size = 0x4, scoped, tag = 'scoped memory for tpu_custom_call.1']
    #allocation5 [shape = 'u8[32768]{0}', space=vmem, size = 0x8000, scoped, tag = 'input window, operand 1, single buffered']
    #allocation6 [shape = 's32[1]{0}', space=sflag, size = 0x4, scoped, tag = 'scoped memory for tpu_custom_call.1']
    #allocation7 [shape = 'u8[131072]{0}', space=vmem, size = 0x20000, scoped, tag = 'output window, operand 0, single buffered']
    #allocation8 [shape = 'u8[512]{0}', space=vmem, size = 0x400, scoped, tag = 'output window, operand 1, single buffered']
    #allocation9 [shape = 's32[1]{0}', space=sflag, size = 0x4, scoped, tag = 'scoped memory for tpu_custom_call.1']
    #allocation10 [shape = 'u8[512]{0}', space=vmem, size = 0x400, scoped, tag = 'output window, operand 2, single buffered']
    %11 = vsyncpa [#allocation3], 0
    %12 = vsyncpa [#allocation6], 0
    %13 = vsyncpa [#allocation4], 0
    %14 = vsyncpa [#allocation9], 0
    // Predicated region
    $region2: #{tpu_custom_call.1} parent=1 // pred_check
      _
    $region3: #{tpu_custom_call.1} parent=1 // pred_check_branch
      %16 = sbr.rel (0) target = $region5
    $region4: #{tpu_custom_call.1} parent=1 // pred_region
      %s18 = ssub.s32 4096, 4096
      %19 = vsyncadd [#allocation3], %s18
      %s20 = sshll.u32 [#allocation2], 4
      %s21 = int_to_ptr.vmem [resolvable:$true] %s20
      %26 = dma.hbm_to_vmem [thread:$0]  %s0, 4096, %s21, [#allocation3], 64, 64, 4
    $region5: #{tpu_custom_call.1} parent=1 // pred_fallthru
      _
    // Predicated region
    $region6: #{tpu_custom_call.1} parent=1 // pred_check
      _
    $region7: #{tpu_custom_call.1} parent=1 // pred_check_branch
      %28 = sbr.rel (0) target = $region9
    $region8: #{tpu_custom_call.1} parent=1 // pred_region
      %s30 = ssub.s32 1024, 1024
      %31 = vsyncadd [#allocation6], %s30
      %s32 = sshll.u32 [#allocation5], 4
      %s33 = int_to_ptr.vmem [resolvable:$true] %s32
      %38 = dma.hbm_to_vmem [thread:$0]  %s1, 1024, %s33, [#allocation6], 64, 64, 4
    $region9: #{tpu_custom_call.1} parent=1 // pred_fallthru
      _
    // Predicated region
    $region10: #{tpu_custom_call.1} parent=1 // pred_check
      _
    $region11: #{tpu_custom_call.1} parent=1 // pred_check_branch
      %40 = sbr.rel (0) target = $region13
    $region12: #{tpu_custom_call.1} parent=1 // pred_region
      _
    $region13: #{tpu_custom_call.1} parent=1 // pred_fallthru
      _
    // Predicated region
    $region14: #{tpu_custom_call.1} parent=1 // pred_check
      _
    $region15: #{tpu_custom_call.1} parent=1 // pred_check_branch
      %42 = sbr.rel (0) target = $region17
    $region16: #{tpu_custom_call.1} parent=1 // pred_region
      %43 = dma.done [#allocation3], 4096
    $region17: #{tpu_custom_call.1} parent=1 // pred_fallthru
      _
    // Predicated region
    $region18: #{tpu_custom_call.1} parent=1 // pred_check
      _
    $region19: #{tpu_custom_call.1} parent=1 // pred_check_branch
      %45 = sbr.rel (0) target = $region21
    $region20: #{tpu_custom_call.1} parent=1 // pred_region
      %46 = dma.done [#allocation6], 1024
    $region21: #{tpu_custom_call.1} parent=1 // pred_fallthru
      _
    %v48 = vld [vmem:[#allocation2] sm:$0xf]
    %v49 = vld [vmem:[#allocation2 + $0x4] sm:$0xf]
    %v50 = vld [vmem:[#allocation2 + $0x8] sm:$0xf]
    %v51 = vld [vmem:[#allocation2 + $0xc] sm:$0xf]
    %v52 = vld [vmem:[#allocation2 + $0x10] sm:$0xf]
    %v53 = vld [vmem:[#allocation2 + $0x14] sm:$0xf]
    %v54 = vld [vmem:[#allocation2 + $0x18] sm:$0xf]
    %v55 = vld [vmem:[#allocation2 + $0x1c] sm:$0xf]
    %v56 = vld [vmem:[#allocation2 + $0x20] sm:$0xf]
    %v57 = vld [vmem:[#allocation2 + $0x24] sm:$0xf]
    %v58 = vld [vmem:[#allocation2 + $0x28] sm:$0xf]
    %v59 = vld [vmem:[#allocation2 + $0x2c] sm:$0xf]
    %v60 = vld [vmem:[#allocation2 + $0x30] sm:$0xf]
    %v61 = vld [vmem:[#allocation2 + $0x34] sm:$0xf]
    %v62 = vld [vmem:[#allocation2 + $0x38] sm:$0xf]
    %v63 = vld [vmem:[#allocation2 + $0x3c] sm:$0xf]
    %v64 = vld [vmem:[#allocation2 + $0x40] sm:$0xf]
    %v65 = vld [vmem:[#allocation2 + $0x44] sm:$0xf]
    %v66 = vld [vmem:[#allocation2 + $0x48] sm:$0xf]
    %v67 = vld [vmem:[#allocation2 + $0x4c] sm:$0xf]
    %v68 = vld [vmem:[#allocation2 + $0x50] sm:$0xf]
    %v69 = vld [vmem:[#allocation2 + $0x54] sm:$0xf]
    %v70 = vld [vmem:[#allocation2 + $0x58] sm:$0xf]
    %v71 = vld [vmem:[#allocation2 + $0x5c] sm:$0xf]
    %v72 = vld [vmem:[#allocation2 + $0x60] sm:$0xf]
    %v73 = vld [vmem:[#allocation2 + $0x64] sm:$0xf]
    %v74 = vld [vmem:[#allocation2 + $0x68] sm:$0xf]
    %v75 = vld [vmem:[#allocation2 + $0x6c] sm:$0xf]
    %v76 = vld [vmem:[#allocation2 + $0x70] sm:$0xf]
    %v77 = vld [vmem:[#allocation2 + $0x74] sm:$0xf]
    %v78 = vld [vmem:[#allocation2 + $0x78] sm:$0xf]
    %v79 = vld [vmem:[#allocation2 + $0x7c] sm:$0xf]
    %v80 = vld [vmem:[#allocation2 + $0x80] sm:$0xf]
    %v81 = vld [vmem:[#allocation2 + $0x84] sm:$0xf]
    %v82 = vld [vmem:[#allocation2 + $0x88] sm:$0xf]
    %v83 = vld [vmem:[#allocation2 + $0x8c] sm:$0xf]
    %v84 = vld [vmem:[#allocation2 + $0x90] sm:$0xf]
    %v85 = vld [vmem:[#allocation2 + $0x94] sm:$0xf]
    %v86 = vld [vmem:[#allocation2 + $0x98] sm:$0xf]
    %v87 = vld [vmem:[#allocation2 + $0x9c] sm:$0xf]
    %v88 = vld [vmem:[#allocation2 + $0xa0] sm:$0xf]
    %v89 = vld [vmem:[#allocation2 + $0xa4] sm:$0xf]
    %v90 = vld [vmem:[#allocation2 + $0xa8] sm:$0xf]
    %v91 = vld [vmem:[#allocation2 + $0xac] sm:$0xf]
    %v92 = vld [vmem:[#allocation2 + $0xb0] sm:$0xf]
    %v93 = vld [vmem:[#allocation2 + $0xb4] sm:$0xf]
    %v94 = vld [vmem:[#allocation2 + $0xb8] sm:$0xf]
    %v95 = vld [vmem:[#allocation2 + $0xbc] sm:$0xf]
    %v96 = vld [vmem:[#allocation2 + $0xc0] sm:$0xf]
    %v97 = vld [vmem:[#allocation2 + $0xc4] sm:$0xf]
    %v98 = vld [vmem:[#allocation2 + $0xc8] sm:$0xf]
    %v99 = vld [vmem:[#allocation2 + $0xcc] sm:$0xf]
    %v100 = vld [vmem:[#allocation2 + $0xd0] sm:$0xf]
    %v101 = vld [vmem:[#allocation2 + $0xd4] sm:$0xf]
    %v102 = vld [vmem:[#allocation2 + $0xd8] sm:$0xf]
    %v103 = vld [vmem:[#allocation2 + $0xdc] sm:$0xf]
    %v104 = vld [vmem:[#allocation2 + $0xe0] sm:$0xf]
    %v105 = vld [vmem:[#allocation2 + $0xe4] sm:$0xf]
    %v106 = vld [vmem:[#allocation2 + $0xe8] sm:$0xf]
    %v107 = vld [vmem:[#allocation2 + $0xec] sm:$0xf]
    %v108 = vld [vmem:[#allocation2 + $0xf0] sm:$0xf]
    %v109 = vld [vmem:[#allocation2 + $0xf4] sm:$0xf]
    %v110 = vld [vmem:[#allocation2 + $0xf8] sm:$0xf]
    %v111 = vld [vmem:[#allocation2 + $0xfc] sm:$0xf]
    %v112 = vld [vmem:[#allocation5] sm:$0xf]
    %v113 = vld [vmem:[#allocation5 + $0x4] sm:$0xf]
    %v114 = vld [vmem:[#allocation5 + $0x8] sm:$0xf]
    %v115 = vld [vmem:[#allocation5 + $0xc] sm:$0xf]
    %v116 = vld [vmem:[#allocation5 + $0x10] sm:$0xf]
    %v117 = vld [vmem:[#allocation5 + $0x14] sm:$0xf]
    %v118 = vld [vmem:[#allocation5 + $0x18] sm:$0xf]
    %v119 = vld [vmem:[#allocation5 + $0x1c] sm:$0xf]
    %v120 = vld [vmem:[#allocation5 + $0x20] sm:$0xf]
    %v121 = vld [vmem:[#allocation5 + $0x24] sm:$0xf]
    %v122 = vld [vmem:[#allocation5 + $0x28] sm:$0xf]
    %v123 = vld [vmem:[#allocation5 + $0x2c] sm:$0xf]
    %v124 = vld [vmem:[#allocation5 + $0x30] sm:$0xf]
    %v125 = vld [vmem:[#allocation5 + $0x34] sm:$0xf]
    %v126 = vld [vmem:[#allocation5 + $0x38] sm:$0xf]
    %v127 = vld [vmem:[#allocation5 + $0x3c] sm:$0xf]
    %v128 = vld [vmem:[%s2] sm:$0x1]
    %v130 = vlaneseq
    %v131 = vshrl.u32 %v130, 7
    %v132 = vsub.s32 0, %v131
    %v133 = vrot.slane %v128, %v132
    %v199 = vunpack.c.l.b16 %v48
    %v200 = vunpack.c.l.b16 %v49
    %v201 = vunpack.c.l.b16 %v50
    %v202 = vunpack.c.l.b16 %v51
    %v203 = vunpack.c.l.b16 %v52
    %v204 = vunpack.c.l.b16 %v53
    %v205 = vunpack.c.l.b16 %v54
    %v206 = vunpack.c.l.b16 %v55
    %v207 = vunpack.c.l.b16 %v56
    %v208 = vunpack.c.l.b16 %v57
    %v209 = vunpack.c.l.b16 %v58
    %v210 = vunpack.c.l.b16 %v59
    %v211 = vunpack.c.l.b16 %v60
    %v212 = vunpack.c.l.b16 %v61
    %v213 = vunpack.c.l.b16 %v62
    %v214 = vunpack.c.l.b16 %v63
    %v215 = vunpack.c.l.b16 %v64
    %v216 = vunpack.c.l.b16 %v65
    %v217 = vunpack.c.l.b16 %v66
    %v218 = vunpack.c.l.b16 %v67
    %v219 = vunpack.c.l.b16 %v68
    %v220 = vunpack.c.l.b16 %v69
    %v221 = vunpack.c.l.b16 %v70
    %v222 = vunpack.c.l.b16 %v71
    %v223 = vunpack.c.l.b16 %v72
    %v224 = vunpack.c.l.b16 %v73
    %v225 = vunpack.c.l.b16 %v74
    %v226 = vunpack.c.l.b16 %v75
    %v227 = vunpack.c.l.b16 %v76
    %v228 = vunpack.c.l.b16 %v77
    %v229 = vunpack.c.l.b16 %v78
    %v230 = vunpack.c.l.b16 %v79
    %v231 = vunpack.c.l.b16 %v80
    %v232 = vunpack.c.l.b16 %v81
    %v233 = vunpack.c.l.b16 %v82
    %v234 = vunpack.c.l.b16 %v83
    %v235 = vunpack.c.l.b16 %v84
    %v236 = vunpack.c.l.b16 %v85
    %v237 = vunpack.c.l.b16 %v86
    %v238 = vunpack.c.l.b16 %v87
    %v239 = vunpack.c.l.b16 %v88
    %v240 = vunpack.c.l.b16 %v89
    %v241 = vunpack.c.l.b16 %v90
    %v242 = vunpack.c.l.b16 %v91
    %v243 = vunpack.c.l.b16 %v92
    %v244 = vunpack.c.l.b16 %v93
    %v245 = vunpack.c.l.b16 %v94
    %v246 = vunpack.c.l.b16 %v95
    %v247 = vunpack.c.l.b16 %v96
    %v248 = vunpack.c.l.b16 %v97
    %v249 = vunpack.c.l.b16 %v98
    %v250 = vunpack.c.l.b16 %v99
    %v251 = vunpack.c.l.b16 %v100
    %v252 = vunpack.c.l.b16 %v101
    %v253 = vunpack.c.l.b16 %v102
    %v254 = vunpack.c.l.b16 %v103
    %v255 = vunpack.c.l.b16 %v104
    %v256 = vunpack.c.l.b16 %v105
    %v257 = vunpack.c.l.b16 %v106
    %v258 = vunpack.c.l.b16 %v107
    %v259 = vunpack.c.l.b16 %v108
    %v260 = vunpack.c.l.b16 %v109
    %v261 = vunpack.c.l.b16 %v110
    %v262 = vunpack.c.l.b16 %v111
    %v263 = vpack.c.b16 %v200, %v199
    %v264 = vpack.c.b16 %v202, %v201
    %v265 = vpack.c.b16 %v204, %v203
    %v266 = vpack.c.b16 %v206, %v205
    %v267 = vpack.c.b16 %v208, %v207
    %v268 = vpack.c.b16 %v210, %v209
    %v269 = vpack.c.b16 %v212, %v211
    %v270 = vpack.c.b16 %v214, %v213
    %v271 = vpack.c.b16 %v216, %v215
    %v272 = vpack.c.b16 %v218, %v217
    %v273 = vpack.c.b16 %v220, %v219
    %v274 = vpack.c.b16 %v222, %v221
    %v275 = vpack.c.b16 %v224, %v223
    %v276 = vpack.c.b16 %v226, %v225
    %v277 = vpack.c.b16 %v228, %v227
    %v278 = vpack.c.b16 %v230, %v229
    %v279 = vpack.c.b16 %v232, %v231
    %v280 = vpack.c.b16 %v234, %v233
    %v281 = vpack.c.b16 %v236, %v235
    %v282 = vpack.c.b16 %v238, %v237
    %v283 = vpack.c.b16 %v240, %v239
    %v284 = vpack.c.b16 %v242, %v241
    %v285 = vpack.c.b16 %v244, %v243
    %v286 = vpack.c.b16 %v246, %v245
    %v287 = vpack.c.b16 %v248, %v247
    %v288 = vpack.c.b16 %v250, %v249
    %v289 = vpack.c.b16 %v252, %v251
    %v290 = vpack.c.b16 %v254, %v253
    %v291 = vpack.c.b16 %v256, %v255
    %v292 = vpack.c.b16 %v258, %v257
    %v293 = vpack.c.b16 %v260, %v259
    %v294 = vpack.c.b16 %v262, %v261
    %v343 = vunpack.c.l.b16 %v112
    %v344 = vunpack.c.l.b16 %v113
    %v345 = vunpack.c.l.b16 %v114
    %v346 = vunpack.c.l.b16 %v115
    %v347 = vunpack.c.l.b16 %v116
    %v348 = vunpack.c.l.b16 %v117
    %v349 = vunpack.c.l.b16 %v118
    %v350 = vunpack.c.l.b16 %v119
    %v351 = vunpack.c.l.b16 %v120
    %v352 = vunpack.c.l.b16 %v121
    %v353 = vunpack.c.l.b16 %v122
    %v354 = vunpack.c.l.b16 %v123
    %v355 = vunpack.c.l.b16 %v124
    %v356 = vunpack.c.l.b16 %v125
    %v357 = vunpack.c.l.b16 %v126
    %v358 = vunpack.c.l.b16 %v127
    %v359 = vpack.c.b16 %v344, %v343
    %v360 = vpack.c.b16 %v346, %v345
    %v361 = vpack.c.b16 %v348, %v347
    %v362 = vpack.c.b16 %v350, %v349
    %v363 = vpack.c.b16 %v352, %v351
    %v364 = vpack.c.b16 %v354, %v353
    %v365 = vpack.c.b16 %v356, %v355
    %v366 = vpack.c.b16 %v358, %v357
    %375 = vmatprep.subr.bf16.mxu0 0
    %376 = vmatpush1.bf16.msra.mxu0 %v359
    %377 = vmatprep.subr.bf16.mxu0 0
    %378 = vmatpush1.bf16.msra.mxu0 %v360
    %379 = vmatprep.subr.bf16.mxu0 0
    %380 = vmatpush1.bf16.msra.mxu0 %v361
    %381 = vmatprep.subr.bf16.mxu0 0
    %382 = vmatpush1.bf16.msra.mxu0 %v362
    %383 = vmatprep.subr.bf16.mxu0 0
    %384 = vmatpush1.bf16.msra.mxu0 %v363
    %385 = vmatprep.subr.bf16.mxu0 0
    %386 = vmatpush1.bf16.msra.mxu0 %v364
    %387 = vmatprep.subr.bf16.mxu0 0
    %388 = vmatpush1.bf16.msra.mxu0 %v365
    %389 = vmatprep.subr.bf16.mxu0 0
    %390 = vmatpush1.bf16.msra.mxu0 %v366
    %391 = vmatprep.subr.bf16.mxu0 0
    %392 = vmatpush1.bf16.msra.mxu0 0
    %393 = vmatprep.subr.bf16.mxu0 0
    %394 = vmatpush1.bf16.msra.mxu0 0
    %395 = vmatprep.subr.bf16.mxu0 0
    %396 = vmatpush1.bf16.msra.mxu0 0
    %397 = vmatprep.subr.bf16.mxu0 0
    %398 = vmatpush1.bf16.msra.mxu0 0
    %399 = vmatprep.subr.bf16.mxu0 0
    %400 = vmatpush1.bf16.msra.mxu0 0
    %401 = vmatprep.subr.bf16.mxu0 0
    %402 = vmatpush1.bf16.msra.mxu0 0
    %403 = vmatprep.subr.bf16.mxu0 0
    %404 = vmatpush1.bf16.msra.mxu0 0
    %405 = vmatprep.subr.bf16.mxu0 0
    %406 = vmatpush1.bf16.msra.mxu0 0
    %407 = vmatprep.mubr.bf16.mxu0 0
    %408 = vmatmul.mubr.bf16.gmra.mrb[0].mxu0 %v263
    %v409 = vpop.f32.mrb[0].mxu0
    %v410 = vadd.f32 %v133, %v409
    %v411 = vpop.f32.mrb[0].mxu0
    %v412 = vpop.f32.mrb[0].mxu0
    %v413 = vadd.f32 %v133, %v412
    %v414 = vpop.f32.mrb[0].mxu0
    %415 = vmatprep.mubr.bf16.mxu0 0
    %416 = vmatmul.mubr.bf16.gmra.mrb[0].mxu0 %v264
    %v417 = vpop.f32.mrb[0].mxu0
    %v418 = vadd.f32 %v133, %v417
    %v419 = vpop.f32.mrb[0].mxu0
    %v420 = vpop.f32.mrb[0].mxu0
    %v421 = vadd.f32 %v133, %v420
    %v422 = vpop.f32.mrb[0].mxu0
    %423 = vmatprep.mubr.bf16.mxu0 0
    %424 = vmatmul.mubr.bf16.gmra.mrb[0].mxu0 %v265
    %v425 = vpop.f32.mrb[0].mxu0
    %v426 = vadd.f32 %v133, %v425
    %v427 = vpop.f32.mrb[0].mxu0
    %v428 = vpop.f32.mrb[0].mxu0
    %v429 = vadd.f32 %v133, %v428
    %v430 = vpop.f32.mrb[0].mxu0
    %431 = vmatprep.mubr.bf16.mxu0 0
    %432 = vmatmul.mubr.bf16.gmra.mrb[0].mxu0 %v266
    %v433 = vpop.f32.mrb[0].mxu0
    %v434 = vadd.f32 %v133, %v433
    %v435 = vpop.f32.mrb[0].mxu0
    %v436 = vpop.f32.mrb[0].mxu0
    %v437 = vadd.f32 %v133, %v436
    %v438 = vpop.f32.mrb[0].mxu0
    %439 = vmatprep.mubr.bf16.mxu0 0
    %440 = vmatmul.mubr.bf16.gmra.mrb[0].mxu0 %v267
    %v441 = vpop.f32.mrb[0].mxu0
    %v442 = vadd.f32 %v133, %v441
    %v443 = vpop.f32.mrb[0].mxu0
    %v444 = vpop.f32.mrb[0].mxu0
    %v445 = vadd.f32 %v133, %v444
    %v446 = vpop.f32.mrb[0].mxu0
    %447 = vmatprep.mubr.bf16.mxu0 0
    %448 = vmatmul.mubr.bf16.gmra.mrb[0].mxu0 %v268
    %v449 = vpop.f32.mrb[0].mxu0
    %v450 = vadd.f32 %v133, %v449
    %v451 = vpop.f32.mrb[0].mxu0
    %v452 = vpop.f32.mrb[0].mxu0
    %v453 = vadd.f32 %v133, %v452
    %v454 = vpop.f32.mrb[0].mxu0
    %455 = vmatprep.mubr.bf16.mxu0 0
    %456 = vmatmul.mubr.bf16.gmra.mrb[0].mxu0 %v269
    %v457 = vpop.f32.mrb[0].mxu0
    %v458 = vadd.f32 %v133, %v457
    %v459 = vpop.f32.mrb[0].mxu0
    %v460 = vpop.f32.mrb[0].mxu0
    %v461 = vadd.f32 %v133, %v460
    %v462 = vpop.f32.mrb[0].mxu0
    %463 = vmatprep.mubr.bf16.mxu0 0
    %464 = vmatmul.mubr.bf16.gmra.mrb[0].mxu0 %v270
    %v465 = vpop.f32.mrb[0].mxu0
    %v466 = vadd.f32 %v133, %v465
    %v467 = vpop.f32.mrb[0].mxu0
    %v468 = vpop.f32.mrb[0].mxu0
    %v469 = vadd.f32 %v133, %v468
    %v470 = vpop.f32.mrb[0].mxu0
    %471 = vmatprep.mubr.bf16.mxu0 0
    %472 = vmatmul.mubr.bf16.gmra.mrb[0].mxu0 %v271
    %v473 = vpop.f32.mrb[0].mxu0
    %v474 = vadd.f32 %v133, %v473
    %v475 = vpop.f32.mrb[0].mxu0
    %v476 = vpop.f32.mrb[0].mxu0
    %v477 = vadd.f32 %v133, %v476
    %v478 = vpop.f32.mrb[0].mxu0
    %479 = vmatprep.mubr.bf16.mxu0 0
    %480 = vmatmul.mubr.bf16.gmra.mrb[0].mxu0 %v272
    %v481 = vpop.f32.mrb[0].mxu0
    %v482 = vadd.f32 %v133, %v481
    %v483 = vpop.f32.mrb[0].mxu0
    %v484 = vpop.f32.mrb[0].mxu0
    %v485 = vadd.f32 %v133, %v484
    %v486 = vpop.f32.mrb[0].mxu0
    %487 = vmatprep.mubr.bf16.mxu0 0
    %488 = vmatmul.mubr.bf16.gmra.mrb[0].mxu0 %v273
    %v489 = vpop.f32.mrb[0].mxu0
    %v490 = vadd.f32 %v133, %v489
    %v491 = vpop.f32.mrb[0].mxu0
    %v492 = vpop.f32.mrb[0].mxu0
    %v493 = vadd.f32 %v133, %v492
    %v494 = vpop.f32.mrb[0].mxu0
    %495 = vmatprep.mubr.bf16.mxu0 0
    %496 = vmatmul.mubr.bf16.gmra.mrb[0].mxu0 %v274
    %v497 = vpop.f32.mrb[0].mxu0
    %v498 = vadd.f32 %v133, %v497
    %v499 = vpop.f32.mrb[0].mxu0
    %v500 = vpop.f32.mrb[0].mxu0
    %v501 = vadd.f32 %v133, %v500
    %v502 = vpop.f32.mrb[0].mxu0
    %503 = vmatprep.mubr.bf16.mxu0 0
    %504 = vmatmul.mubr.bf16.gmra.mrb[0].mxu0 %v275
    %v505 = vpop.f32.mrb[0].mxu0
    %v506 = vadd.f32 %v133, %v505
    %v507 = vpop.f32.mrb[0].mxu0
    %v508 = vpop.f32.mrb[0].mxu0
    %v509 = vadd.f32 %v133, %v508
    %v510 = vpop.f32.mrb[0].mxu0
    %511 = vmatprep.mubr.bf16.mxu0 0
    %512 = vmatmul.mubr.bf16.gmra.mrb[0].mxu0 %v276
    %v513 = vpop.f32.mrb[0].mxu0
    %v514 = vadd.f32 %v133, %v513
    %v515 = vpop.f32.mrb[0].mxu0
    %v516 = vpop.f32.mrb[0].mxu0
    %v517 = vadd.f32 %v133, %v516
    %v518 = vpop.f32.mrb[0].mxu0
    %519 = vmatprep.mubr.bf16.mxu0 0
    %520 = vmatmul.mubr.bf16.gmra.mrb[0].mxu0 %v277
    %v521 = vpop.f32.mrb[0].mxu0
    %v522 = vadd.f32 %v133, %v521
    %v523 = vpop.f32.mrb[0].mxu0
    %v524 = vpop.f32.mrb[0].mxu0
    %v525 = vadd.f32 %v133, %v524
    %v526 = vpop.f32.mrb[0].mxu0
    %527 = vmatprep.mubr.bf16.mxu0 0
    %528 = vmatmul.mubr.bf16.gmra.mrb[0].mxu0 %v278
    %v529 = vpop.f32.mrb[0].mxu0
    %v530 = vadd.f32 %v133, %v529
    %v531 = vpop.f32.mrb[0].mxu0
    %v532 = vpop.f32.mrb[0].mxu0
    %v533 = vadd.f32 %v133, %v532
    %v534 = vpop.f32.mrb[0].mxu0
    %535 = vmatprep.mubr.bf16.mxu0 0
    %536 = vmatmul.mubr.bf16.gmra.mrb[0].mxu0 %v279
    %v537 = vpop.f32.mrb[0].mxu0
    %v538 = vadd.f32 %v133, %v537
    %v539 = vpop.f32.mrb[0].mxu0
    %v540 = vpop.f32.mrb[0].mxu0
    %v541 = vadd.f32 %v133, %v540
    %v542 = vpop.f32.mrb[0].mxu0
    %543 = vmatprep.mubr.bf16.mxu0 0
    %544 = vmatmul.mubr.bf16.gmra.mrb[0].mxu0 %v280
    %v545 = vpop.f32.mrb[0].mxu0
    %v546 = vadd.f32 %v133, %v545
    %v547 = vpop.f32.mrb[0].mxu0
    %v548 = vpop.f32.mrb[0].mxu0
    %v549 = vadd.f32 %v133, %v548
    %v550 = vpop.f32.mrb[0].mxu0
    %551 = vmatprep.mubr.bf16.mxu0 0
    %552 = vmatmul.mubr.bf16.gmra.mrb[0].mxu0 %v281
    %v553 = vpop.f32.mrb[0].mxu0
    %v554 = vadd.f32 %v133, %v553
    %v555 = vpop.f32.mrb[0].mxu0
    %v556 = vpop.f32.mrb[0].mxu0
    %v557 = vadd.f32 %v133, %v556
    %v558 = vpop.f32.mrb[0].mxu0
    %559 = vmatprep.mubr.bf16.mxu0 0
    %560 = vmatmul.mubr.bf16.gmra.mrb[0].mxu0 %v282
    %v561 = vpop.f32.mrb[0].mxu0
    %v562 = vadd.f32 %v133, %v561
    %v563 = vpop.f32.mrb[0].mxu0
    %v564 = vpop.f32.mrb[0].mxu0
    %v565 = vadd.f32 %v133, %v564
    %v566 = vpop.f32.mrb[0].mxu0
    %567 = vmatprep.mubr.bf16.mxu0 0
    %568 = vmatmul.mubr.bf16.gmra.mrb[0].mxu0 %v283
    %v569 = vpop.f32.mrb[0].mxu0
    %v570 = vadd.f32 %v133, %v569
    %v571 = vpop.f32.mrb[0].mxu0
    %v572 = vpop.f32.mrb[0].mxu0
    %v573 = vadd.f32 %v133, %v572
    %v574 = vpop.f32.mrb[0].mxu0
    %575 = vmatprep.mubr.bf16.mxu0 0
    %576 = vmatmul.mubr.bf16.gmra.mrb[0].mxu0 %v284
    %v577 = vpop.f32.mrb[0].mxu0
    %v578 = vadd.f32 %v133, %v577
    %v579 = vpop.f32.mrb[0].mxu0
    %v580 = vpop.f32.mrb[0].mxu0
    %v581 = vadd.f32 %v133, %v580
    %v582 = vpop.f32.mrb[0].mxu0
    %583 = vmatprep.mubr.bf16.mxu0 0
    %584 = vmatmul.mubr.bf16.gmra.mrb[0].mxu0 %v285
    %v585 = vpop.f32.mrb[0].mxu0
    %v586 = vadd.f32 %v133, %v585
    %v587 = vpop.f32.mrb[0].mxu0
    %v588 = vpop.f32.mrb[0].mxu0
    %v589 = vadd.f32 %v133, %v588
    %v590 = vpop.f32.mrb[0].mxu0
    %591 = vmatprep.mubr.bf16.mxu0 0
    %592 = vmatmul.mubr.bf16.gmra.mrb[0].mxu0 %v286
    %v593 = vpop.f32.mrb[0].mxu0
    %v594 = vadd.f32 %v133, %v593
    %v595 = vpop.f32.mrb[0].mxu0
    %v596 = vpop.f32.mrb[0].mxu0
    %v597 = vadd.f32 %v133, %v596
    %v598 = vpop.f32.mrb[0].mxu0
    %599 = vmatprep.mubr.bf16.mxu0 0
    %600 = vmatmul.mubr.bf16.gmra.mrb[0].mxu0 %v287
    %v601 = vpop.f32.mrb[0].mxu0
    %v602 = vadd.f32 %v133, %v601
    %v603 = vpop.f32.mrb[0].mxu0
    %v604 = vpop.f32.mrb[0].mxu0
    %v605 = vadd.f32 %v133, %v604
    %v606 = vpop.f32.mrb[0].mxu0
    %607 = vmatprep.mubr.bf16.mxu0 0
    %608 = vmatmul.mubr.bf16.gmra.mrb[0].mxu0 %v288
    %v609 = vpop.f32.mrb[0].mxu0
    %v610 = vadd.f32 %v133, %v609
    %v611 = vpop.f32.mrb[0].mxu0
    %v612 = vpop.f32.mrb[0].mxu0
    %v613 = vadd.f32 %v133, %v612
    %v614 = vpop.f32.mrb[0].mxu0
    %615 = vmatprep.mubr.bf16.mxu0 0
    %616 = vmatmul.mubr.bf16.gmra.mrb[0].mxu0 %v289
    %v617 = vpop.f32.mrb[0].mxu0
    %v618 = vadd.f32 %v133, %v617
    %v619 = vpop.f32.mrb[0].mxu0
    %v620 = vpop.f32.mrb[0].mxu0
    %v621 = vadd.f32 %v133, %v620
    %v622 = vpop.f32.mrb[0].mxu0
    %623 = vmatprep.mubr.bf16.mxu0 0
    %624 = vmatmul.mubr.bf16.gmra.mrb[0].mxu0 %v290
    %v625 = vpop.f32.mrb[0].mxu0
    %v626 = vadd.f32 %v133, %v625
    %v627 = vpop.f32.mrb[0].mxu0
    %v628 = vpop.f32.mrb[0].mxu0
    %v629 = vadd.f32 %v133, %v628
    %v630 = vpop.f32.mrb[0].mxu0
    %631 = vmatprep.mubr.bf16.mxu0 0
    %632 = vmatmul.mubr.bf16.gmra.mrb[0].mxu0 %v291
    %v633 = vpop.f32.mrb[0].mxu0
    %v634 = vadd.f32 %v133, %v633
    %v635 = vpop.f32.mrb[0].mxu0
    %v636 = vpop.f32.mrb[0].mxu0
    %v637 = vadd.f32 %v133, %v636
    %v638 = vpop.f32.mrb[0].mxu0
    %639 = vmatprep.mubr.bf16.mxu0 0
    %640 = vmatmul.mubr.bf16.gmra.mrb[0].mxu0 %v292
    %v641 = vpop.f32.mrb[0].mxu0
    %v642 = vadd.f32 %v133, %v641
    %v643 = vpop.f32.mrb[0].mxu0
    %v644 = vpop.f32.mrb[0].mxu0
    %v645 = vadd.f32 %v133, %v644
    %v646 = vpop.f32.mrb[0].mxu0
    %647 = vmatprep.mubr.bf16.mxu0 0
    %648 = vmatmul.mubr.bf16.gmra.mrb[0].mxu0 %v293
    %v649 = vpop.f32.mrb[0].mxu0
    %v650 = vadd.f32 %v133, %v649
    %v651 = vpop.f32.mrb[0].mxu0
    %v652 = vpop.f32.mrb[0].mxu0
    %v653 = vadd.f32 %v133, %v652
    %v654 = vpop.f32.mrb[0].mxu0
    %655 = vmatprep.mubr.bf16.mxu0 0
    %656 = vmatmul.mubr.bf16.gmra.mrb[0].mxu0 %v294
    %v657 = vpop.f32.mrb[0].mxu0
    %v658 = vadd.f32 %v133, %v657
    %v659 = vpop.f32.mrb[0].mxu0
    %v660 = vpop.f32.mrb[0].mxu0
    %v661 = vadd.f32 %v133, %v660
    %v662 = vpop.f32.mrb[0].mxu0
    %663 = vdwg.mxu0
    %v664 = vpack.c.bf16 %v413, %v410
    %v665 = vpack.c.bf16 %v421, %v418
    %v666 = vpack.c.bf16 %v429, %v426
    %v667 = vpack.c.bf16 %v437, %v434
    %v668 = vpack.c.bf16 %v445, %v442
    %v669 = vpack.c.bf16 %v453, %v450
    %v670 = vpack.c.bf16 %v461, %v458
    %v671 = vpack.c.bf16 %v469, %v466
    %v672 = vpack.c.bf16 %v477, %v474
    %v673 = vpack.c.bf16 %v485, %v482
    %v674 = vpack.c.bf16 %v493, %v490
    %v675 = vpack.c.bf16 %v501, %v498
    %v676 = vpack.c.bf16 %v509, %v506
    %v677 = vpack.c.bf16 %v517, %v514
    %v678 = vpack.c.bf16 %v525, %v522
    %v679 = vpack.c.bf16 %v533, %v530
    %v680 = vpack.c.bf16 %v541, %v538
    %v681 = vpack.c.bf16 %v549, %v546
    %v682 = vpack.c.bf16 %v557, %v554
    %v683 = vpack.c.bf16 %v565, %v562
    %v684 = vpack.c.bf16 %v573, %v570
    %v685 = vpack.c.bf16 %v581, %v578
    %v686 = vpack.c.bf16 %v589, %v586
    %v687 = vpack.c.bf16 %v597, %v594
    %v688 = vpack.c.bf16 %v605, %v602
    %v689 = vpack.c.bf16 %v613, %v610
    %v690 = vpack.c.bf16 %v621, %v618
    %v691 = vpack.c.bf16 %v629, %v626
    %v692 = vpack.c.bf16 %v637, %v634
    %v693 = vpack.c.bf16 %v645, %v642
    %v694 = vpack.c.bf16 %v653, %v650
    %v695 = vpack.c.bf16 %v661, %v658
    %v728 = vunpack.c.l.b16 %v664
    %v729 = vunpack.c.h.b16 %v664
    %v730 = vunpack.c.l.b16 %v665
    %v731 = vunpack.c.h.b16 %v665
    %v732 = vunpack.c.l.b16 %v666
    %v733 = vunpack.c.h.b16 %v666
    %v734 = vunpack.c.l.b16 %v667
    %v735 = vunpack.c.h.b16 %v667
    %v736 = vunpack.c.l.b16 %v668
    %v737 = vunpack.c.h.b16 %v668
    %v738 = vunpack.c.l.b16 %v669
    %v739 = vunpack.c.h.b16 %v669
    %v740 = vunpack.c.l.b16 %v670
    %v741 = vunpack.c.h.b16 %v670
    %v742 = vunpack.c.l.b16 %v671
    %v743 = vunpack.c.h.b16 %v671
    %v744 = vunpack.c.l.b16 %v672
    %v745 = vunpack.c.h.b16 %v672
    %v746 = vunpack.c.l.b16 %v673
    %v747 = vunpack.c.h.b16 %v673
    %v748 = vunpack.c.l.b16 %v674
    %v749 = vunpack.c.h.b16 %v674
    %v750 = vunpack.c.l.b16 %v675
    %v751 = vunpack.c.h.b16 %v675
    %v752 = vunpack.c.l.b16 %v676
    %v753 = vunpack.c.h.b16 %v676
    %v754 = vunpack.c.l.b16 %v677
    %v755 = vunpack.c.h.b16 %v677
    %v756 = vunpack.c.l.b16 %v678
    %v757 = vunpack.c.h.b16 %v678
    %v758 = vunpack.c.l.b16 %v679
    %v759 = vunpack.c.h.b16 %v679
    %v760 = vunpack.c.l.b16 %v680
    %v761 = vunpack.c.h.b16 %v680
    %v762 = vunpack.c.l.b16 %v681
    %v763 = vunpack.c.h.b16 %v681
    %v764 = vunpack.c.l.b16 %v682
    %v765 = vunpack.c.h.b16 %v682
    %v766 = vunpack.c.l.b16 %v683
    %v767 = vunpack.c.h.b16 %v683
    %v768 = vunpack.c.l.b16 %v684
    %v769 = vunpack.c.h.b16 %v684
    %v770 = vunpack.c.l.b16 %v685
    %v771 = vunpack.c.h.b16 %v685
    %v772 = vunpack.c.l.b16 %v686
    %v773 = vunpack.c.h.b16 %v686
    %v774 = vunpack.c.l.b16 %v687
    %v775 = vunpack.c.h.b16 %v687
    %v776 = vunpack.c.l.b16 %v688
    %v777 = vunpack.c.h.b16 %v688
    %v778 = vunpack.c.l.b16 %v689
    %v779 = vunpack.c.h.b16 %v689
    %v780 = vunpack.c.l.b16 %v690
    %v781 = vunpack.c.h.b16 %v690
    %v782 = vunpack.c.l.b16 %v691
    %v783 = vunpack.c.h.b16 %v691
    %v784 = vunpack.c.l.b16 %v692
    %v785 = vunpack.c.h.b16 %v692
    %v786 = vunpack.c.l.b16 %v693
    %v787 = vunpack.c.h.b16 %v693
    %v788 = vunpack.c.l.b16 %v694
    %v789 = vunpack.c.h.b16 %v694
    %v790 = vunpack.c.l.b16 %v695
    %v791 = vunpack.c.h.b16 %v695
    %v792 = vpack.c.b16 %v728, %v728
    %v793 = vpack.c.b16 %v729, %v729
    %v794 = vpack.c.b16 %v730, %v730
    %v795 = vpack.c.b16 %v731, %v731
    %v796 = vpack.c.b16 %v732, %v732
    %v797 = vpack.c.b16 %v733, %v733
    %v798 = vpack.c.b16 %v734, %v734
    %v799 = vpack.c.b16 %v735, %v735
    %v800 = vpack.c.b16 %v736, %v736
    %v801 = vpack.c.b16 %v737, %v737
    %v802 = vpack.c.b16 %v738, %v738
    %v803 = vpack.c.b16 %v739, %v739
    %v804 = vpack.c.b16 %v740, %v740
    %v805 = vpack.c.b16 %v741, %v741
    %v806 = vpack.c.b16 %v742, %v742
    %v807 = vpack.c.b16 %v743, %v743
    %v808 = vpack.c.b16 %v744, %v744
    %v809 = vpack.c.b16 %v745, %v745
    %v810 = vpack.c.b16 %v746, %v746
    %v811 = vpack.c.b16 %v747, %v747
    %v812 = vpack.c.b16 %v748, %v748
    %v813 = vpack.c.b16 %v749, %v749
    %v814 = vpack.c.b16 %v750, %v750
    %v815 = vpack.c.b16 %v751, %v751
    %v816 = vpack.c.b16 %v752, %v752
    %v817 = vpack.c.b16 %v753, %v753
    %v818 = vpack.c.b16 %v754, %v754
    %v819 = vpack.c.b16 %v755, %v755
    %v820 = vpack.c.b16 %v756, %v756
    %v821 = vpack.c.b16 %v757, %v757
    %v822 = vpack.c.b16 %v758, %v758
    %v823 = vpack.c.b16 %v759, %v759
    %v824 = vpack.c.b16 %v760, %v760
    %v825 = vpack.c.b16 %v761, %v761
    %v826 = vpack.c.b16 %v762, %v762
    %v827 = vpack.c.b16 %v763, %v763
    %v828 = vpack.c.b16 %v764, %v764
    %v829 = vpack.c.b16 %v765, %v765
    %v830 = vpack.c.b16 %v766, %v766
    %v831 = vpack.c.b16 %v767, %v767
    %v832 = vpack.c.b16 %v768, %v768
    %v833 = vpack.c.b16 %v769, %v769
    %v834 = vpack.c.b16 %v770, %v770
    %v835 = vpack.c.b16 %v771, %v771
    %v836 = vpack.c.b16 %v772, %v772
    %v837 = vpack.c.b16 %v773, %v773
    %v838 = vpack.c.b16 %v774, %v774
    %v839 = vpack.c.b16 %v775, %v775
    %v840 = vpack.c.b16 %v776, %v776
    %v841 = vpack.c.b16 %v777, %v777
    %v842 = vpack.c.b16 %v778, %v778
    %v843 = vpack.c.b16 %v779, %v779
    %v844 = vpack.c.b16 %v780, %v780
    %v845 = vpack.c.b16 %v781, %v781
    %v846 = vpack.c.b16 %v782, %v782
    %v847 = vpack.c.b16 %v783, %v783
    %v848 = vpack.c.b16 %v784, %v784
    %v849 = vpack.c.b16 %v785, %v785
    %v850 = vpack.c.b16 %v786, %v786
    %v851 = vpack.c.b16 %v787, %v787
    %v852 = vpack.c.b16 %v788, %v788
    %v853 = vpack.c.b16 %v789, %v789
    %v854 = vpack.c.b16 %v790, %v790
    %v855 = vpack.c.b16 %v791, %v791
    %920 = vst [vmem:[#allocation7] sm:$0xf] %v792
    %921 = vst [vmem:[#allocation7 + $0x4] sm:$0xf] %v793
    %922 = vst [vmem:[#allocation7 + $0x8] sm:$0xf] %v794
    %923 = vst [vmem:[#allocation7 + $0xc] sm:$0xf] %v795
    %924 = vst [vmem:[#allocation7 + $0x10] sm:$0xf] %v796
    %925 = vst [vmem:[#allocation7 + $0x14] sm:$0xf] %v797
    %926 = vst [vmem:[#allocation7 + $0x18] sm:$0xf] %v798
    %927 = vst [vmem:[#allocation7 + $0x1c] sm:$0xf] %v799
    %928 = vst [vmem:[#allocation7 + $0x20] sm:$0xf] %v800
    %929 = vst [vmem:[#allocation7 + $0x24] sm:$0xf] %v801
    %930 = vst [vmem:[#allocation7 + $0x28] sm:$0xf] %v802
    %931 = vst [vmem:[#allocation7 + $0x2c] sm:$0xf] %v803
    %932 = vst [vmem:[#allocation7 + $0x30] sm:$0xf] %v804
    %933 = vst [vmem:[#allocation7 + $0x34] sm:$0xf] %v805
    %934 = vst [vmem:[#allocation7 + $0x38] sm:$0xf] %v806
    %935 = vst [vmem:[#allocation7 + $0x3c] sm:$0xf] %v807
    %936 = vst [vmem:[#allocation7 + $0x40] sm:$0xf] %v808
    %937 = vst [vmem:[#allocation7 + $0x44] sm:$0xf] %v809
    %938 = vst [vmem:[#allocation7 + $0x48] sm:$0xf] %v810
    %939 = vst [vmem:[#allocation7 + $0x4c] sm:$0xf] %v811
    %940 = vst [vmem:[#allocation7 + $0x50] sm:$0xf] %v812
    %941 = vst [vmem:[#allocation7 + $0x54] sm:$0xf] %v813
    %942 = vst [vmem:[#allocation7 + $0x58] sm:$0xf] %v814
    %943 = vst [vmem:[#allocation7 + $0x5c] sm:$0xf] %v815
    %944 = vst [vmem:[#allocation7 + $0x60] sm:$0xf] %v816
    %945 = vst [vmem:[#allocation7 + $0x64] sm:$0xf] %v817
    %946 = vst [vmem:[#allocation7 + $0x68] sm:$0xf] %v818
    %947 = vst [vmem:[#allocation7 + $0x6c] sm:$0xf] %v819
    %948 = vst [vmem:[#allocation7 + $0x70] sm:$0xf] %v820
    %949 = vst [vmem:[#allocation7 + $0x74] sm:$0xf] %v821
    %950 = vst [vmem:[#allocation7 + $0x78] sm:$0xf] %v822
    %951 = vst [vmem:[#allocation7 + $0x7c] sm:$0xf] %v823
    %952 = vst [vmem:[#allocation7 + $0x80] sm:$0xf] %v824
    %953 = vst [vmem:[#allocation7 + $0x84] sm:$0xf] %v825
    %954 = vst [vmem:[#allocation7 + $0x88] sm:$0xf] %v826
    %955 = vst [vmem:[#allocation7 + $0x8c] sm:$0xf] %v827
    %956 = vst [vmem:[#allocation7 + $0x90] sm:$0xf] %v828
    %957 = vst [vmem:[#allocation7 + $0x94] sm:$0xf] %v829
    %958 = vst [vmem:[#allocation7 + $0x98] sm:$0xf] %v830
    %959 = vst [vmem:[#allocation7 + $0x9c] sm:$0xf] %v831
    %960 = vst [vmem:[#allocation7 + $0xa0] sm:$0xf] %v832
    %961 = vst [vmem:[#allocation7 + $0xa4] sm:$0xf] %v833
    %962 = vst [vmem:[#allocation7 + $0xa8] sm:$0xf] %v834
    %963 = vst [vmem:[#allocation7 + $0xac] sm:$0xf] %v835
    %964 = vst [vmem:[#allocation7 + $0xb0] sm:$0xf] %v836
    %965 = vst [vmem:[#allocation7 + $0xb4] sm:$0xf] %v837
    %966 = vst [vmem:[#allocation7 + $0xb8] sm:$0xf] %v838
    %967 = vst [vmem:[#allocation7 + $0xbc] sm:$0xf] %v839
    %968 = vst [vmem:[#allocation7 + $0xc0] sm:$0xf] %v840
    %969 = vst [vmem:[#allocation7 + $0xc4] sm:$0xf] %v841
    %970 = vst [vmem:[#allocation7 + $0xc8] sm:$0xf] %v842
    %971 = vst [vmem:[#allocation7 + $0xcc] sm:$0xf] %v843
    %972 = vst [vmem:[#allocation7 + $0xd0] sm:$0xf] %v844
    %973 = vst [vmem:[#allocation7 + $0xd4] sm:$0xf] %v845
    %974 = vst [vmem:[#allocation7 + $0xd8] sm:$0xf] %v846
    %975 = vst [vmem:[#allocation7 + $0xdc] sm:$0xf] %v847
    %976 = vst [vmem:[#allocation7 + $0xe0] sm:$0xf] %v848
    %977 = vst [vmem:[#allocation7 + $0xe4] sm:$0xf] %v849
    %978 = vst [vmem:[#allocation7 + $0xe8] sm:$0xf] %v850
    %979 = vst [vmem:[#allocation7 + $0xec] sm:$0xf] %v851
    %980 = vst [vmem:[#allocation7 + $0xf0] sm:$0xf] %v852
    %981 = vst [vmem:[#allocation7 + $0xf4] sm:$0xf] %v853
    %982 = vst [vmem:[#allocation7 + $0xf8] sm:$0xf] %v854
    %983 = vst [vmem:[#allocation7 + $0xfc] sm:$0xf] %v855
    %984 = vmatprep.subr.mxu0 0.0
    %985 = vmatpush1.msra.mxu0 %v410
    %986 = vmatprep.subr.mxu0 0.0
    %987 = vmatpush1.msra.mxu0 %v413
    %988 = vmatprep.subr.mxu0 0.0
    %989 = vmatpush1.msra.mxu0 %v418
    %990 = vmatprep.subr.mxu0 0.0
    %991 = vmatpush1.msra.mxu0 %v421
    %992 = vmatprep.subr.mxu0 0.0
    %993 = vmatpush1.msra.mxu0 %v426
    %994 = vmatprep.subr.mxu0 0.0
    %995 = vmatpush1.msra.mxu0 %v429
    %996 = vmatprep.subr.mxu0 0.0
    %997 = vmatpush1.msra.mxu0 %v434
    %998 = vmatprep.subr.mxu0 0.0
    %999 = vmatpush1.msra.mxu0 %v437
    %1000 = vmatprep.subr.mxu0 0.0
    %1001 = vmatpush1.msra.mxu0 %v442
    %1002 = vmatprep.subr.mxu0 0.0
    %1003 = vmatpush1.msra.mxu0 %v445
    %1004 = vmatprep.subr.mxu0 0.0
    %1005 = vmatpush1.msra.mxu0 %v450
    %1006 = vmatprep.subr.mxu0 0.0
    %1007 = vmatpush1.msra.mxu0 %v453
    %1008 = vmatprep.subr.mxu0 0.0
    %1009 = vmatpush1.msra.mxu0 %v458
    %1010 = vmatprep.subr.mxu0 0.0
    %1011 = vmatpush1.msra.mxu0 %v461
    %1012 = vmatprep.subr.mxu0 0.0
    %1013 = vmatpush1.msra.mxu0 %v466
    %1014 = vmatprep.subr.mxu0 0.0
    %1015 = vmatpush1.msra.mxu0 %v469
    %1016 = vmatprep.subr.mxu0 0.0
    %1017 = vmatpush1.msra.mxu0 %v474
    %1018 = vmatprep.subr.mxu0 0.0
    %1019 = vmatpush1.msra.mxu0 %v477
    %1020 = vmatprep.subr.mxu0 0.0
    %1021 = vmatpush1.msra.mxu0 %v482
    %1022 = vmatprep.subr.mxu0 0.0
    %1023 = vmatpush1.msra.mxu0 %v485
    %1024 = vmatprep.subr.mxu0 0.0
    %1025 = vmatpush1.msra.mxu0 %v490
    %1026 = vmatprep.subr.mxu0 0.0
    %1027 = vmatpush1.msra.mxu0 %v493
    %1028 = vmatprep.subr.mxu0 0.0
    %1029 = vmatpush1.msra.mxu0 %v498
    %1030 = vmatprep.subr.mxu0 0.0
    %1031 = vmatpush1.msra.mxu0 %v501
    %1032 = vmatprep.subr.mxu0 0.0
    %1033 = vmatpush1.msra.mxu0 %v506
    %1034 = vmatprep.subr.mxu0 0.0
    %1035 = vmatpush1.msra.mxu0 %v509
    %1036 = vmatprep.subr.mxu0 0.0
    %1037 = vmatpush1.msra.mxu0 %v514
    %1038 = vmatprep.subr.mxu0 0.0
    %1039 = vmatpush1.msra.mxu0 %v517
    %1040 = vmatprep.subr.mxu0 0.0
    %1041 = vmatpush1.msra.mxu0 %v522
    %1042 = vmatprep.subr.mxu0 0.0
    %1043 = vmatpush1.msra.mxu0 %v525
    %1044 = vmatprep.subr.mxu0 0.0
    %1045 = vmatpush1.msra.mxu0 %v530
    %1046 = vmatprep.subr.mxu0 0.0
    %1047 = vmatpush1.msra.mxu0 %v533
    %1048 = vmatprep.mubr.f32.mxu0 1.0
    %1049 = vmatmul.mubr.f32.gmra.mrb[0].mxu0 1.0
    %v1050 = vpop.f32.mrb[0].mxu0
    %v1051 = vadd.f32 0.0, %v1050
    %v1052 = vpop.f32.mrb[0].mxu0
    %1053 = vdwg.mxu0
    %1054 = vmatprep.subr.mxu0 0.0
    %1055 = vmatpush1.msra.mxu0 %v538
    %1056 = vmatprep.subr.mxu0 0.0
    %1057 = vmatpush1.msra.mxu0 %v541
    %1058 = vmatprep.subr.mxu0 0.0
    %1059 = vmatpush1.msra.mxu0 %v546
    %1060 = vmatprep.subr.mxu0 0.0
    %1061 = vmatpush1.msra.mxu0 %v549
    %1062 = vmatprep.subr.mxu0 0.0
    %1063 = vmatpush1.msra.mxu0 %v554
    %1064 = vmatprep.subr.mxu0 0.0
    %1065 = vmatpush1.msra.mxu0 %v557
    %1066 = vmatprep.subr.mxu0 0.0
    %1067 = vmatpush1.msra.mxu0 %v562
    %1068 = vmatprep.subr.mxu0 0.0
    %1069 = vmatpush1.msra.mxu0 %v565
    %1070 = vmatprep.subr.mxu0 0.0
    %1071 = vmatpush1.msra.mxu0 %v570
    %1072 = vmatprep.subr.mxu0 0.0
    %1073 = vmatpush1.msra.mxu0 %v573
    %1074 = vmatprep.subr.mxu0 0.0
    %1075 = vmatpush1.msra.mxu0 %v578
    %1076 = vmatprep.subr.mxu0 0.0
    %1077 = vmatpush1.msra.mxu0 %v581
    %1078 = vmatprep.subr.mxu0 0.0
    %1079 = vmatpush1.msra.mxu0 %v586
    %1080 = vmatprep.subr.mxu0 0.0
    %1081 = vmatpush1.msra.mxu0 %v589
    %1082 = vmatprep.subr.mxu0 0.0
    %1083 = vmatpush1.msra.mxu0 %v594
    %1084 = vmatprep.subr.mxu0 0.0
    %1085 = vmatpush1.msra.mxu0 %v597
    %1086 = vmatprep.subr.mxu0 0.0
    %1087 = vmatpush1.msra.mxu0 %v602
    %1088 = vmatprep.subr.mxu0 0.0
    %1089 = vmatpush1.msra.mxu0 %v605
    %1090 = vmatprep.subr.mxu0 0.0
    %1091 = vmatpush1.msra.mxu0 %v610
    %1092 = vmatprep.subr.mxu0 0.0
    %1093 = vmatpush1.msra.mxu0 %v613
    %1094 = vmatprep.subr.mxu0 0.0
    %1095 = vmatpush1.msra.mxu0 %v618
    %1096 = vmatprep.subr.mxu0 0.0
    %1097 = vmatpush1.msra.mxu0 %v621
    %1098 = vmatprep.subr.mxu0 0.0
    %1099 = vmatpush1.msra.mxu0 %v626
    %1100 = vmatprep.subr.mxu0 0.0
    %1101 = vmatpush1.msra.mxu0 %v629
    %1102 = vmatprep.subr.mxu0 0.0
    %1103 = vmatpush1.msra.mxu0 %v634
    %1104 = vmatprep.subr.mxu0 0.0
    %1105 = vmatpush1.msra.mxu0 %v637
    %1106 = vmatprep.subr.mxu0 0.0
    %1107 = vmatpush1.msra.mxu0 %v642
    %1108 = vmatprep.subr.mxu0 0.0
    %1109 = vmatpush1.msra.mxu0 %v645
    %1110 = vmatprep.subr.mxu0 0.0
    %1111 = vmatpush1.msra.mxu0 %v650
    %1112 = vmatprep.subr.mxu0 0.0
    %1113 = vmatpush1.msra.mxu0 %v653
    %1114 = vmatprep.subr.mxu0 0.0
    %1115 = vmatpush1.msra.mxu0 %v658
    %1116 = vmatprep.subr.mxu0 0.0
    %1117 = vmatpush1.msra.mxu0 %v661
    %1118 = vmatprep.mubr.f32.mxu0 1.0
    %1119 = vmatmul.mubr.f32.gmra.mrb[0].mxu0 1.0
    %v1120 = vpop.f32.mrb[0].mxu0
    %v1121 = vadd.f32 %v1051, %v1120
    %v1122 = vpop.f32.mrb[0].mxu0
    %1123 = vdwg.mxu0
    %1124 = vst [vmem:[#allocation8] sm:$0x1] %v1121
    %v1125 = vmul.f32 %v410, %v410
    %v1126 = vmul.f32 %v413, %v413
    %v1127 = vmul.f32 %v418, %v418
    %v1128 = vmul.f32 %v421, %v421
    %v1129 = vmul.f32 %v426, %v426
    %v1130 = vmul.f32 %v429, %v429
    %v1131 = vmul.f32 %v434, %v434
    %v1132 = vmul.f32 %v437, %v437
    %v1133 = vmul.f32 %v442, %v442
    %v1134 = vmul.f32 %v445, %v445
    %v1135 = vmul.f32 %v450, %v450
    %v1136 = vmul.f32 %v453, %v453
    %v1137 = vmul.f32 %v458, %v458
    %v1138 = vmul.f32 %v461, %v461
    %v1139 = vmul.f32 %v466, %v466
    %v1140 = vmul.f32 %v469, %v469
    %v1141 = vmul.f32 %v474, %v474
    %v1142 = vmul.f32 %v477, %v477
    %v1143 = vmul.f32 %v482, %v482
    %v1144 = vmul.f32 %v485, %v485
    %v1145 = vmul.f32 %v490, %v490
    %v1146 = vmul.f32 %v493, %v493
    %v1147 = vmul.f32 %v498, %v498
    %v1148 = vmul.f32 %v501, %v501
    %v1149 = vmul.f32 %v506, %v506
    %v1150 = vmul.f32 %v509, %v509
    %v1151 = vmul.f32 %v514, %v514
    %v1152 = vmul.f32 %v517, %v517
    %v1153 = vmul.f32 %v522, %v522
    %v1154 = vmul.f32 %v525, %v525
    %v1155 = vmul.f32 %v530, %v530
    %v1156 = vmul.f32 %v533, %v533
    %v1157 = vmul.f32 %v538, %v538
    %v1158 = vmul.f32 %v541, %v541
    %v1159 = vmul.f32 %v546, %v546
    %v1160 = vmul.f32 %v549, %v549
    %v1161 = vmul.f32 %v554, %v554
    %v1162 = vmul.f32 %v557, %v557
    %v1163 = vmul.f32 %v562, %v562
    %v1164 = vmul.f32 %v565, %v565
    %v1165 = vmul.f32 %v570, %v570
    %v1166 = vmul.f32 %v573, %v573
    %v1167 = vmul.f32 %v578, %v578
    %v1168 = vmul.f32 %v581, %v581
    %v1169 = vmul.f32 %v586, %v586
    %v1170 = vmul.f32 %v589, %v589
    %v1171 = vmul.f32 %v594, %v594
    %v1172 = vmul.f32 %v597, %v597
    %v1173 = vmul.f32 %v602, %v602
    %v1174 = vmul.f32 %v605, %v605
    %v1175 = vmul.f32 %v610, %v610
    %v1176 = vmul.f32 %v613, %v613
    %v1177 = vmul.f32 %v618, %v618
    %v1178 = vmul.f32 %v621, %v621
    %v1179 = vmul.f32 %v626, %v626
    %v1180 = vmul.f32 %v629, %v629
    %v1181 = vmul.f32 %v634, %v634
    %v1182 = vmul.f32 %v637, %v637
    %v1183 = vmul.f32 %v642, %v642
    %v1184 = vmul.f32 %v645, %v645
    %v1185 = vmul.f32 %v650, %v650
    %v1186 = vmul.f32 %v653, %v653
    %v1187 = vmul.f32 %v658, %v658
    %v1188 = vmul.f32 %v661, %v661
    %1189 = vmatprep.subr.mxu0 0.0
    %1190 = vmatpush1.msra.mxu0 %v1125
    %1191 = vmatprep.subr.mxu0 0.0
    %1192 = vmatpush1.msra.mxu0 %v1126
    %1193 = vmatprep.subr.mxu0 0.0
    %1194 = vmatpush1.msra.mxu0 %v1127
    %1195 = vmatprep.subr.mxu0 0.0
    %1196 = vmatpush1.msra.mxu0 %v1128
    %1197 = vmatprep.subr.mxu0 0.0
    %1198 = vmatpush1.msra.mxu0 %v1129
    %1199 = vmatprep.subr.mxu0 0.0
    %1200 = vmatpush1.msra.mxu0 %v1130
    %1201 = vmatprep.subr.mxu0 0.0
    %1202 = vmatpush1.msra.mxu0 %v1131
    %1203 = vmatprep.subr.mxu0 0.0
    %1204 = vmatpush1.msra.mxu0 %v1132
    %1205 = vmatprep.subr.mxu0 0.0
    %1206 = vmatpush1.msra.mxu0 %v1133
    %1207 = vmatprep.subr.mxu0 0.0
    %1208 = vmatpush1.msra.mxu0 %v1134
    %1209 = vmatprep.subr.mxu0 0.0
    %1210 = vmatpush1.msra.mxu0 %v1135
    %1211 = vmatprep.subr.mxu0 0.0
    %1212 = vmatpush1.msra.mxu0 %v1136
    %1213 = vmatprep.subr.mxu0 0.0
    %1214 = vmatpush1.msra.mxu0 %v1137
    %1215 = vmatprep.subr.mxu0 0.0
    %1216 = vmatpush1.msra.mxu0 %v1138
    %1217 = vmatprep.subr.mxu0 0.0
    %1218 = vmatpush1.msra.mxu0 %v1139
    %1219 = vmatprep.subr.mxu0 0.0
    %1220 = vmatpush1.msra.mxu0 %v1140
    %1221 = vmatprep.subr.mxu0 0.0
    %1222 = vmatpush1.msra.mxu0 %v1141
    %1223 = vmatprep.subr.mxu0 0.0
    %1224 = vmatpush1.msra.mxu0 %v1142
    %1225 = vmatprep.subr.mxu0 0.0
    %1226 = vmatpush1.msra.mxu0 %v1143
    %1227 = vmatprep.subr.mxu0 0.0
    %1228 = vmatpush1.msra.mxu0 %v1144
    %1229 = vmatprep.subr.mxu0 0.0
    %1230 = vmatpush1.msra.mxu0 %v1145
    %1231 = vmatprep.subr.mxu0 0.0
    %1232 = vmatpush1.msra.mxu0 %v1146
    %1233 = vmatprep.subr.mxu0 0.0
    %1234 = vmatpush1.msra.mxu0 %v1147
    %1235 = vmatprep.subr.mxu0 0.0
    %1236 = vmatpush1.msra.mxu0 %v1148
    %1237 = vmatprep.subr.mxu0 0.0
    %1238 = vmatpush1.msra.mxu0 %v1149
    %1239 = vmatprep.subr.mxu0 0.0
    %1240 = vmatpush1.msra.mxu0 %v1150
    %1241 = vmatprep.subr.mxu0 0.0
    %1242 = vmatpush1.msra.mxu0 %v1151
    %1243 = vmatprep.subr.mxu0 0.0
    %1244 = vmatpush1.msra.mxu0 %v1152
    %1245 = vmatprep.subr.mxu0 0.0
    %1246 = vmatpush1.msra.mxu0 %v1153
    %1247 = vmatprep.subr.mxu0 0.0
    %1248 = vmatpush1.msra.mxu0 %v1154
    %1249 = vmatprep.subr.mxu0 0.0
    %1250 = vmatpush1.msra.mxu0 %v1155
    %1251 = vmatprep.subr.mxu0 0.0
    %1252 = vmatpush1.msra.mxu0 %v1156
    %1253 = vmatprep.mubr.f32.mxu0 1.0
    %1254 = vmatmul.mubr.f32.gmra.mrb[0].mxu0 1.0
    %v1255 = vpop.f32.mrb[0].mxu0
    %v1256 = vadd.f32 0.0, %v1255
    %v1257 = vpop.f32.mrb[0].mxu0
    %1258 = vdwg.mxu0
    %1259 = vmatprep.subr.mxu0 0.0
    %1260 = vmatpush1.msra.mxu0 %v1157
    %1261 = vmatprep.subr.mxu0 0.0
    %1262 = vmatpush1.msra.mxu0 %v1158
    %1263 = vmatprep.subr.mxu0 0.0
    %1264 = vmatpush1.msra.mxu0 %v1159
    %1265 = vmatprep.subr.mxu0 0.0
    %1266 = vmatpush1.msra.mxu0 %v1160
    %1267 = vmatprep.subr.mxu0 0.0
    %1268 = vmatpush1.msra.mxu0 %v1161
    %1269 = vmatprep.subr.mxu0 0.0
    %1270 = vmatpush1.msra.mxu0 %v1162
    %1271 = vmatprep.subr.mxu0 0.0
    %1272 = vmatpush1.msra.mxu0 %v1163
    %1273 = vmatprep.subr.mxu0 0.0
    %1274 = vmatpush1.msra.mxu0 %v1164
    %1275 = vmatprep.subr.mxu0 0.0
    %1276 = vmatpush1.msra.mxu0 %v1165
    %1277 = vmatprep.subr.mxu0 0.0
    %1278 = vmatpush1.msra.mxu0 %v1166
    %1279 = vmatprep.subr.mxu0 0.0
    %1280 = vmatpush1.msra.mxu0 %v1167
    %1281 = vmatprep.subr.mxu0 0.0
    %1282 = vmatpush1.msra.mxu0 %v1168
    %1283 = vmatprep.subr.mxu0 0.0
    %1284 = vmatpush1.msra.mxu0 %v1169
    %1285 = vmatprep.subr.mxu0 0.0
    %1286 = vmatpush1.msra.mxu0 %v1170
    %1287 = vmatprep.subr.mxu0 0.0
    %1288 = vmatpush1.msra.mxu0 %v1171
    %1289 = vmatprep.subr.mxu0 0.0
    %1290 = vmatpush1.msra.mxu0 %v1172
    %1291 = vmatprep.subr.mxu0 0.0
    %1292 = vmatpush1.msra.mxu0 %v1173
    %1293 = vmatprep.subr.mxu0 0.0
    %1294 = vmatpush1.msra.mxu0 %v1174
    %1295 = vmatprep.subr.mxu0 0.0
    %1296 = vmatpush1.msra.mxu0 %v1175
    %1297 = vmatprep.subr.mxu0 0.0
    %1298 = vmatpush1.msra.mxu0 %v1176
    %1299 = vmatprep.subr.mxu0 0.0
    %1300 = vmatpush1.msra.mxu0 %v1177
    %1301 = vmatprep.subr.mxu0 0.0
    %1302 = vmatpush1.msra.mxu0 %v1178
    %1303 = vmatprep.subr.mxu0 0.0
    %1304 = vmatpush1.msra.mxu0 %v1179
    %1305 = vmatprep.subr.mxu0 0.0
    %1306 = vmatpush1.msra.mxu0 %v1180
    %1307 = vmatprep.subr.mxu0 0.0
    %1308 = vmatpush1.msra.mxu0 %v1181
    %1309 = vmatprep.subr.mxu0 0.0
    %1310 = vmatpush1.msra.mxu0 %v1182
    %1311 = vmatprep.subr.mxu0 0.0
    %1312 = vmatpush1.msra.mxu0 %v1183
    %1313 = vmatprep.subr.mxu0 0.0
    %1314 = vmatpush1.msra.mxu0 %v1184
    %1315 = vmatprep.subr.mxu0 0.0
    %1316 = vmatpush1.msra.mxu0 %v1185
    %1317 = vmatprep.subr.mxu0 0.0
    %1318 = vmatpush1.msra.mxu0 %v1186
    %1319 = vmatprep.subr.mxu0 0.0
    %1320 = vmatpush1.msra.mxu0 %v1187
    %1321 = vmatprep.subr.mxu0 0.0
    %1322 = vmatpush1.msra.mxu0 %v1188
    %1323 = vmatprep.mubr.f32.mxu0 1.0
    %1324 = vmatmul.mubr.f32.gmra.mrb[0].mxu0 1.0
    %v1325 = vpop.f32.mrb[0].mxu0
    %v1326 = vadd.f32 %v1256, %v1325
    %v1327 = vpop.f32.mrb[0].mxu0
    %1328 = vdwg.mxu0
    %1329 = vst [vmem:[#allocation10] sm:$0x1] %v1326
    // Predicated region
    $region22: #{tpu_custom_call.1} parent=1 // pred_check
      _
    $region23: #{tpu_custom_call.1} parent=1 // pred_check_branch
      %1331 = sbr.rel (0) target = $region25
    $region24: #{tpu_custom_call.1} parent=1 // pred_region
      %s1333 = ssub.s32 4096, 4096
      %1334 = vsyncadd [#allocation4], %s1333
      %s1335 = sshll.u32 [#allocation7], 4
      %s1336 = int_to_ptr.vmem [resolvable:$true] %s1335
      %1341 = dma.vmem_to_hbm [thread:$0]  %s1336, 4096, %s3, [#allocation4], 64, 64, 4
    $region25: #{tpu_custom_call.1} parent=1 // pred_fallthru
      _
    // Predicated region
    $region26: #{tpu_custom_call.1} parent=1 // pred_check
      _
    $region27: #{tpu_custom_call.1} parent=1 // pred_check_branch
      %1343 = sbr.rel (0) target = $region29
    $region28: #{tpu_custom_call.1} parent=1 // pred_region
      %s1345 = ssub.s32 16, 16
      %1346 = vsyncadd [#allocation9], %s1345
      %s1348 = sshll.u32 [#allocation8], 4
      %s1349 = int_to_ptr.vmem [resolvable:$true] %s1348
      %1351 = dma.vmem_to_hbm [thread:$0]  %s1349, 16, %s4, [#allocation9]
    $region29: #{tpu_custom_call.1} parent=1 // pred_fallthru
      _
    // Predicated region
    $region30: #{tpu_custom_call.1} parent=1 // pred_check
      _
    $region31: #{tpu_custom_call.1} parent=1 // pred_check_branch
      %1353 = sbr.rel (0) target = $region33
    $region32: #{tpu_custom_call.1} parent=1 // pred_region
      %s1355 = ssub.s32 16, 16
      %1356 = vsyncadd [#allocation9], %s1355
      %s1358 = sshll.u32 [#allocation10], 4
      %s1359 = int_to_ptr.vmem [resolvable:$true] %s1358
      %1361 = dma.vmem_to_hbm [thread:$0]  %s1359, 16, %s5, [#allocation9]
    $region33: #{tpu_custom_call.1} parent=1 // pred_fallthru
      _
    // Predicated region
    $region34: #{tpu_custom_call.1} parent=1 // pred_check
      _
    $region35: #{tpu_custom_call.1} parent=1 // pred_check_branch
      %1363 = sbr.rel (0) target = $region37
    $region36: #{tpu_custom_call.1} parent=1 // pred_region
      %1364 = dma.done [#allocation4], 4096
    $region37: #{tpu_custom_call.1} parent=1 // pred_fallthru
      _
    // Predicated region
    $region38: #{tpu_custom_call.1} parent=1 // pred_check
      _
    $region39: #{tpu_custom_call.1} parent=1 // pred_check_branch
      %1366 = sbr.rel (0) target = $region41
    $region40: #{tpu_custom_call.1} parent=1 // pred_region
      %1367 = dma.done [#allocation9], 16
    $region41: #{tpu_custom_call.1} parent=1 // pred_fallthru
      _
    // Predicated region
    $region42: #{tpu_custom_call.1} parent=1 // pred_check
      _
    $region43: #{tpu_custom_call.1} parent=1 // pred_check_branch
      %1369 = sbr.rel (0) target = $region45
    $region44: #{tpu_custom_call.1} parent=1 // pred_region
      %1370 = dma.done [#allocation9], 16
    $region45: #{tpu_custom_call.1} parent=1 // pred_fallthru
      _
    %1371 = vsyncpa [#allocation3], 1
    %1372 = vsyncpa [#allocation6], 1
    %1373 = vsyncpa [#allocation4], 1
    %1374 = vsyncpa [#allocation9], 1

</llo_original>
